<compile_context>
chip_gen: v5e
topology: v5e:2x2
jax: 0.10.0
libtpu: 0.0.40
codegen_flags: <defaults>
</compile_context>

<pallas_src>
import functools

import jax
import jax.numpy as jnp
from jax.experimental import pallas as pl
from jax.experimental.pallas import tpu as pltpu


# ----------------------------------------------------------------------------
# Fused Pallas kernel: copy the static mesh slab and the textures slab into a
# single packed output slab (pure pass-through, no arithmetic).
# ----------------------------------------------------------------------------
def _mesh_pack_copy_kernel(mesh_ref, tex_ref, out_ref):
    n_mesh = mesh_ref.shape[1]          # 128-lane aligned (padded at init)
    n_tex = tex_ref.shape[1]
    out_ref[:, :n_mesh] = mesh_ref[...]
    out_ref[:, n_mesh:n_mesh + n_tex] = tex_ref[...]


def _lane_pad(n: int) -> int:
    """Round up to a multiple of 128 (one vreg lane row)."""
    return ((n + 127) // 128) * 128


@functools.partial(jax.jit, static_argnums=(2, 3, 4))
def _forward_impl(mesh_slab_i32, textures, num_vertices, num_faces, n_mesh_pad):
    """Equivalent of `.clone().repeat(1, 1, 1)` on (vertices, faces, textures),
    fused into one Pallas dispatch.  All slicing/bitcasting fuses under jit."""
    B = textures.shape[0]
    C = textures.shape[2]
    n_vert = num_vertices * C                        # 192
    n_face = num_faces * C                           # 384
    n_tex = n_vert                                   # 192
    total = n_mesh_pad + n_tex                       # 640 + 192 = 832

    # Lane-dense, single-dtype (int32) view of textures.
    tex_i32 = jax.lax.bitcast_convert_type(
        textures.reshape(B, n_tex), jnp.int32)

    vmem = pl.BlockSpec(memory_space=pltpu.MemorySpace.VMEM)
    out_slab = pl.pallas_call(
        _mesh_pack_copy_kernel,
        out_shape=jax.ShapeDtypeStruct((B, total), jnp.int32),
        # No grid: single invocation, each array is one full VMEM block.
        in_specs=[vmem, vmem],
        out_specs=vmem,
        cost_estimate=pl.CostEstimate(
            flops=0, transcendentals=0,
            bytes_accessed=(n_mesh_pad + n_tex + total) * 4 * B),
    )(mesh_slab_i32, tex_i32)

    # Unpack (static slices; pad words are dropped).
    vertices = jax.lax.bitcast_convert_type(
        out_slab[:, :n_vert], jnp.float32).reshape(B, num_vertices, C)
    faces = out_slab[:, n_vert:n_vert + n_face].reshape(B, num_faces, C)
    tex = jax.lax.bitcast_convert_type(
        out_slab[:, n_mesh_pad:n_mesh_pad + n_tex],
        jnp.float32).reshape(B, num_vertices, C)
    return vertices, faces, tex


# ----------------------------------------------------------------------------
# Model: synthetic template mesh + zero-initialized `textures` parameter.
# ----------------------------------------------------------------------------
class Model:
    def __init__(self, num_vertices: int = 64, num_faces: int = 128, key=None):
        if key is None:
            key = jax.random.PRNGKey(0)
        kv, kf = jax.random.split(key)
        # Deterministic synthetic template mesh (stands in for sr.Mesh.from_obj).
        self.template_vertices = jax.random.normal(
            kv, (1, num_vertices, 3), dtype=jnp.float32)
        self.template_faces = jax.random.randint(
            kf, (1, num_faces, 3), minval=0, maxval=num_vertices,
            dtype=jnp.int32)
        # nn.Parameter(torch.zeros_like(vertices))
        self.textures = jnp.zeros_like(self.template_vertices)

        self.num_vertices = num_vertices
        self.num_faces = num_faces

        # Pack the static mesh ONCE into a single int32 slab (vertices bitcast
        # ‖ faces), padded to a multiple of 128 lanes -> (1, 640).
        n_vert = num_vertices * 3
        n_face = num_faces * 3
        n_mesh = n_vert + n_face
        self._n_mesh_pad = _lane_pad(n_mesh)
        v_i32 = jax.lax.bitcast_convert_type(
            self.template_vertices.reshape(1, n_vert), jnp.int32)
        f_i32 = self.template_faces.reshape(1, n_face)
        pad = jnp.zeros((1, self._n_mesh_pad - n_mesh), dtype=jnp.int32)
        self._mesh_slab = jnp.concatenate([v_i32, f_i32, pad], axis=1)

    def forward(self):
        textures = self.textures
        # sr.Mesh(vertices.clone().repeat(1,1,1), faces.clone().repeat(1,1,1),
        #         textures=textures.repeat(1,1,1), texture_res=1,
        #         texture_type='vertex')
        vertices, faces, tex = _forward_impl(
            self._mesh_slab, textures,
            self.num_vertices, self.num_faces, self._n_mesh_pad)
        # TODO(synk): sr.Mesh object construction (lazy face_vertices gather
        # etc.) performs no tensor compute at forward time; return its contents.
        return {
            "vertices": vertices,
            "faces": faces,
            "textures": tex,
            "texture_res": 1,
            "texture_type": "vertex",
        }


if __name__ == "__main__":
    key = jax.random.PRNGKey(0)
    model = Model(num_vertices=64, num_faces=128, key=key)

    mesh = model.forward()
    jax.block_until_ready(mesh["vertices"])
    jax.block_until_ready(mesh["faces"])
    jax.block_until_ready(mesh["textures"])

    # Correctness checks against the reference semantics (clone/repeat == copy).
    assert mesh["vertices"].shape == (1, 64, 3)
    assert mesh["faces"].shape == (1, 128, 3)
    assert mesh["textures"].shape == (1, 64, 3)
    assert mesh["vertices"].dtype == jnp.float32
    assert mesh["faces"].dtype == jnp.int32
    assert mesh["textures"].dtype == jnp.float32
    assert jnp.array_equal(mesh["vertices"], model.template_vertices)
    assert jnp.array_equal(mesh["faces"], model.template_faces)
    assert jnp.array_equal(mesh["textures"], jnp.zeros((1, 64, 3), jnp.float32))

    print("KERNEL_OK")
</pallas_src>

<mosaic_0001>
module attributes {stable_mosaic.version = 11 : i64} {
  func.func @_mesh_pack_copy_kernel(%arg0: memref<1x640xi32, #tpu.memory_space<vmem>>, %arg1: memref<1x192xi32, #tpu.memory_space<vmem>>, %arg2: memref<1x832xi32, #tpu.memory_space<vmem>>) attributes {dimension_semantics = [], scalar_prefetch = 0 : i64, scratch_operands = 0 : i64, tpu.core_type = #tpu.core_type<tc>} {
    %c0 = arith.constant 0 : index
    %c0_0 = arith.constant 0 : index
    %0 = vector.load %arg0[%c0, %c0_0] : memref<1x640xi32, #tpu.memory_space<vmem>>, vector<1x640xi32>
    %c0_1 = arith.constant 0 : index
    %c0_2 = arith.constant 0 : index
    %1 = vector.load %arg2[%c0_1, %c0_2] : memref<1x832xi32, #tpu.memory_space<vmem>>, vector<1x640xi32>
    tpu.vector_store %arg2[%c0_1, %c0_2], %0 {strides = array<i32>} : memref<1x832xi32, #tpu.memory_space<vmem>>, vector<1x640xi32>,
    %c0_3 = arith.constant 0 : index
    %c0_4 = arith.constant 0 : index
    %2 = vector.load %arg1[%c0_3, %c0_4] : memref<1x192xi32, #tpu.memory_space<vmem>>, vector<1x192xi32>
    %c0_5 = arith.constant 0 : index
    %c640 = arith.constant 640 : index
    %3 = vector.load %arg2[%c0_5, %c640] : memref<1x832xi32, #tpu.memory_space<vmem>>, vector<1x192xi32>
    tpu.vector_store %arg2[%c0_5, %c640], %2 {strides = array<i32>} : memref<1x832xi32, #tpu.memory_space<vmem>>, vector<1x192xi32>,
    return
  }
}

</mosaic_0001>

<llo_original>
// kernel: _forward_impl.1
$region0: #{_forward_impl.1}
  #allocation0 [shape = 'u32[]', space=smem, size = 0x4, offset = 0x4, fixed_abs, tag = 'smem constant byte address 0x4 - core index']
  #allocation1 [shape = 'u32[72,128]{1,0:T(1,128)}', space=vmem, size = 0x9000, scoped, tag = 'internal scratch']
  %s0 = inlined_call_operand.vmem [shape: s32[1,640], index: 0, kind: input, shape index: {}]
  %s1 = inlined_call_operand.vmem [shape: s32[1,192], index: 1, kind: input, shape index: {}]
  %s2 = inlined_call_operand.vmem [shape: s32[1,832], index: 2, kind: output, shape index: {}]
  %s3 = sld [smem:[#allocation0]]
  $region18: #{_forward_impl.1} parent=0
    _
  %s5 = ssub.s32 1, %s3
  %s6 = scalar_select 0, %s5, %s3
  // Predicated region
  $region2: #{_forward_impl.1} parent=0 // pred_check
    _
  $region3: #{_forward_impl.1} parent=0 // pred_check_branch
    %8 = sbr.rel (0) target = $region5
  $region4: #{_forward_impl.1} parent=0 // pred_region
    _
  $region5: #{_forward_impl.1} parent=0 // pred_fallthru
    _
  // Predicated region
  $region6: #{_forward_impl.1} parent=0 // pred_check
    _
  $region7: #{_forward_impl.1} parent=0 // pred_check_branch
    %10 = sbr.rel (0) target = $region9
  $region8: #{_forward_impl.1} parent=0 // pred_region
    _
  $region9: #{_forward_impl.1} parent=0 // pred_fallthru
    _
  %v11 = vld [vmem:[%s0] sm:$0x1f]
  %v12 = vlaneseq
  %vm13 = vcmp.ge.s32.totalorder %v12, 0
  %vm14 = vcmp.lt.s32.totalorder %v12, 640
  %vm15 = vmand %vm13, %vm14
  %16 = vst.msk [vmem:[%s2] sm:$0x1f] %vm15, %v11
  %v17 = vld [vmem:[%s1] sm:$0x3]
  %vm18 = vcmp.lt.s32.totalorder %v12, 192
  %vm19 = vmand %vm13, %vm18
  %20 = vst.msk [vmem:[%s2 + $0x5] sm:$0x3] %vm19, %v17
  // Predicated region
  $region10: #{_forward_impl.1} parent=0 // pred_check
    _
  $region11: #{_forward_impl.1} parent=0 // pred_check_branch
    %22 = sbr.rel (0) target = $region13
  $region12: #{_forward_impl.1} parent=0 // pred_region
    _
  $region13: #{_forward_impl.1} parent=0 // pred_fallthru
    _
  // Predicated region
  $region14: #{_forward_impl.1} parent=0 // pred_check
    _
  $region15: #{_forward_impl.1} parent=0 // pred_check_branch
    %24 = sbr.rel (0) target = $region17
  $region16: #{_forward_impl.1} parent=0 // pred_region
    _
  $region17: #{_forward_impl.1} parent=0 // pred_fallthru
    _

</llo_original>
